<compile_context>
chip_gen: v7x
topology: tpu7x:2x2x1
jax: 0.10.0
libtpu: 0.0.40
codegen_flags: <defaults>
</compile_context>

<pallas_src>
import jax
import jax.numpy as jnp
from jax import lax
import numpy as np
from jax.experimental import pallas as pl
from jax.experimental.pallas import tpu as pltpu


def _meta_imputer_kernel(p_ref, w_ref, b_ref, o_ref):
    # p_ref: (K, BM)     im2col'ed input columns (BM lane-dense, mult of 128)
    # w_ref: (Cout, K)   folded effective 5x5+1x1 weights
    # b_ref: (Cout, 1)   folded effective bias (kept f32)
    # o_ref: (Cout, BM)  transposed output slab (lane-dense stores)
    acc = jnp.dot(w_ref[...], p_ref[...], preferred_element_type=jnp.float32)
    o_ref[...] = (acc + b_ref[...]).astype(o_ref.dtype)


def meta_imputer(x_nhwc, w3, b3, w5, b5, w1, b1, *, matmul_dtype=None):
    """MetaImputer forward.

    x_nhwc: (N, H, W, Cin); w3/w5 in HWIO; w1: (Cin+num3+num5, Cout).
    Returns (N, H, W, Cout) in x_nhwc.dtype.
    matmul_dtype: optional dtype (e.g. jnp.bfloat16) for the MXU operands;
    accumulation and the bias epilogue stay in f32.
    """
    N, H, W, Cin = x_nhwc.shape
    num3 = w3.shape[-1]
    num5 = w5.shape[-1]
    Cout = w1.shape[-1]
    K = 25 * Cin
    M = N * H * W

    # ---- Fold the 1x1 conv into an effective 5x5 conv (trace-time, tiny). ----
    w1_x = w1[0:Cin, :]                       # (Cin,  Cout)
    w1_3 = w1[Cin:Cin + num3, :]              # (num3, Cout)
    w1_5 = w1[Cin + num3:, :]                 # (num5, Cout)
    w_eff = jnp.einsum("ijcm,mo->ijco", w5, w1_5)                     # (5,5,Cin,Cout)
    w_eff = w_eff.at[1:4, 1:4].add(jnp.einsum("ijcm,mo->ijco", w3, w1_3))
    w_eff = w_eff.at[2, 2].add(w1_x)
    b_eff = b3 @ w1_3 + b5 @ w1_5 + b1                                # (Cout,)

    # K ordering is (tap, Cin) -- must match the im2col ordering below.
    w_t = w_eff.reshape(K, Cout).T                                    # (Cout, K)
    b_col = b_eff.reshape(Cout, 1).astype(jnp.float32)

    # ---- im2col in the wrapper: lane-dense (K, M) slab. ----------------------
    xpad = jnp.pad(x_nhwc, ((0, 0), (2, 2), (2, 2), (0, 0)), mode="reflect")
    taps = jnp.stack([xpad[:, dy:dy + H, dx:dx + W, :]
                      for dy in range(5) for dx in range(5)], axis=0)  # (25,N,H,W,Cin)
    patches_t = taps.transpose(0, 4, 1, 2, 3).reshape(K, M)            # (K, M)

    if matmul_dtype is not None:
        patches_t = patches_t.astype(matmul_dtype)
        w_t = w_t.astype(matmul_dtype)

    # ---- Block the M (lane) dim; >=2 blocks lets v7x use both TensorCores. ---
    if M % 256 == 0:
        block_m = 256
    elif M % 128 == 0:
        block_m = 128
    else:
        block_m = M  # full extent (always legal)

    out_t = pl.pallas_call(
        _meta_imputer_kernel,
        out_shape=jax.ShapeDtypeStruct((Cout, M), x_nhwc.dtype),
        grid_spec=pltpu.PrefetchScalarGridSpec(
            num_scalar_prefetch=0,
            grid=(M // block_m,),
            in_specs=[
                pl.BlockSpec((K, block_m), lambda m: (0, m)),   # im2col columns
                pl.BlockSpec((Cout, K), lambda m: (0, 0)),      # folded weights
                pl.BlockSpec((Cout, 1), lambda m: (0, 0)),      # folded bias
            ],
            out_specs=pl.BlockSpec((Cout, block_m), lambda m: (0, m)),
        ),
        compiler_params=pltpu.CompilerParams(
            dimension_semantics=("parallel",)),
    )(patches_t, w_t, b_col)

    # Un-transpose: (Cout, N*H*W) -> (N, H, W, Cout).
    return out_t.reshape(Cout, N, H, W).transpose(1, 2, 3, 0)


def meta_imputer_ref(x_nhwc, w3, b3, w5, b5, w1, b1):
    """Pure-JAX reference matching the PyTorch forward (in NHWC)."""
    dn = ("NHWC", "HWIO", "NHWC")
    xp3 = jnp.pad(x_nhwc, ((0, 0), (1, 1), (1, 1), (0, 0)), mode="reflect")
    c3 = lax.conv_general_dilated(xp3, w3, (1, 1), "VALID",
                                  dimension_numbers=dn) + b3
    xp5 = jnp.pad(x_nhwc, ((0, 0), (2, 2), (2, 2), (0, 0)), mode="reflect")
    c5 = lax.conv_general_dilated(xp5, w5, (1, 1), "VALID",
                                  dimension_numbers=dn) + b5
    cat = jnp.concatenate([x_nhwc, c3, c5], axis=-1)
    return jnp.einsum("nhwc,cd->nhwd", cat, w1) + b1


if __name__ == "__main__":
    # Small shapes consistent with the module: batch=2, Cin=4, 16x16 spatial.
    N, H, W = 2, 16, 16
    Cin, num3, num5 = 4, 8, 8
    Ctot = Cin + num3 + num5

    key = jax.random.PRNGKey(0)
    kx, k3, kb3, k5, kb5, k1, kb1 = jax.random.split(key, 7)

    x = jax.random.normal(kx, (N, H, W, Cin), jnp.float32)

    # Deterministic synthetic parameters (HWIO / (Ctot, Cout) layouts).
    w3 = jax.random.normal(k3, (3, 3, Cin, num3), jnp.float32) * 0.1
    b3 = jax.random.normal(kb3, (num3,), jnp.float32) * 0.1
    w5 = jax.random.normal(k5, (5, 5, Cin, num5), jnp.float32) * 0.1
    b5 = jax.random.normal(kb5, (num5,), jnp.float32) * 0.1
    w1 = jax.random.normal(k1, (Ctot, Cin), jnp.float32) * 0.1
    b1 = jax.random.normal(kb1, (Cin,), jnp.float32) * 0.1

    ref = jax.block_until_ready(meta_imputer_ref(x, w3, b3, w5, b5, w1, b1))

    # f32 path (tight check).
    out = jax.block_until_ready(meta_imputer(x, w3, b3, w5, b5, w1, b1))
    np.testing.assert_allclose(np.asarray(out), np.asarray(ref),
                               rtol=1e-4, atol=1e-4)

    # bf16 MXU operands, f32 accumulate/epilogue (preferred on v6e/v7x).
    out_bf16 = jax.block_until_ready(
        meta_imputer(x, w3, b3, w5, b5, w1, b1, matmul_dtype=jnp.bfloat16))
    np.testing.assert_allclose(np.asarray(out_bf16), np.asarray(ref),
                               rtol=2e-2, atol=2e-2)

    print("KERNEL_OK")
</pallas_src>

<mosaic_0001>
module attributes {stable_mosaic.version = 11 : i64} {
  func.func @_meta_imputer_kernel(%arg0: i32, %arg1: memref<100x256xf32, #tpu.memory_space<vmem>>, %arg2: memref<4x100xf32, #tpu.memory_space<vmem>>, %arg3: memref<4x1xf32, #tpu.memory_space<vmem>>, %arg4: memref<4x256xf32, #tpu.memory_space<vmem>>) attributes {dimension_semantics = [#tpu.dimension_semantics<parallel>], iteration_bounds = array<i64: 2>, scalar_prefetch = 0 : i64, scratch_operands = 0 : i64, tpu.core_type = #tpu.core_type<tc>, window_params = [{transform_indices = @transform_0, window_bounds = array<i64: 100, 256>}, {pipeline_mode = #tpu.pipeline_mode<synchronous>, transform_indices = @transform_1, window_bounds = array<i64: 4, 100>}, {pipeline_mode = #tpu.pipeline_mode<synchronous>, transform_indices = @transform_2, window_bounds = array<i64: 4, 1>}, {transform_indices = @transform_3, window_bounds = array<i64: 4, 256>}]} {
    %c0 = arith.constant 0 : index
    %c0_0 = arith.constant 0 : index
    %0 = vector.load %arg2[%c0, %c0_0] : memref<4x100xf32, #tpu.memory_space<vmem>>, vector<4x100xf32>
    %c0_1 = arith.constant 0 : index
    %c0_2 = arith.constant 0 : index
    %1 = vector.load %arg1[%c0_1, %c0_2] : memref<100x256xf32, #tpu.memory_space<vmem>>, vector<100x256xf32>
    %cst = arith.constant dense<0.000000e+00> : vector<4x256xf32>
    %2 = tpu.matmul %0, %1, %cst {dimension_numbers = #tpu.dot_dimension_numbers<[1], [0], [0], [1], [0, 0, 1, 1], [], []>} : vector<4x100xf32>, vector<100x256xf32>, vector<4x256xf32> -> vector<4x256xf32>
    %c0_3 = arith.constant 0 : index
    %c0_4 = arith.constant 0 : index
    %3 = vector.load %arg3[%c0_3, %c0_4] : memref<4x1xf32, #tpu.memory_space<vmem>>, vector<4x1xf32>
    %4 = vector.broadcast %3 : vector<4x1xf32> to vector<4x256xf32>
    %5 = arith.addf %2, %4 : vector<4x256xf32>
    %c0_5 = arith.constant 0 : index
    %c0_6 = arith.constant 0 : index
    %6 = vector.load %arg4[%c0_5, %c0_6] : memref<4x256xf32, #tpu.memory_space<vmem>>, vector<4x256xf32>
    tpu.vector_store %arg4[%c0_5, %c0_6], %5 {strides = array<i32>} : memref<4x256xf32, #tpu.memory_space<vmem>>, vector<4x256xf32>,
    return
  }
  func.func @transform_0(%arg0: i32) -> (i32, i32) {
    %c0_i32 = arith.constant 0 : i32
    %c0_i32_0 = arith.constant 0 : i32
    return %c0_i32, %arg0 : i32, i32
  }
  func.func @transform_1(%arg0: i32) -> (i32, i32) {
    %c0_i32 = arith.constant 0 : i32
    %c0_i32_0 = arith.constant 0 : i32
    %c0_i32_1 = arith.constant 0 : i32
    return %c0_i32, %c0_i32_0 : i32, i32
  }
  func.func @transform_2(%arg0: i32) -> (i32, i32) {
    %c0_i32 = arith.constant 0 : i32
    %c0_i32_0 = arith.constant 0 : i32
    %c0_i32_1 = arith.constant 0 : i32
    return %c0_i32, %c0_i32_0 : i32, i32
  }
  func.func @transform_3(%arg0: i32) -> (i32, i32) {
    %c0_i32 = arith.constant 0 : i32
    %c0_i32_0 = arith.constant 0 : i32
    return %c0_i32, %arg0 : i32, i32
  }
}

</mosaic_0001>

<llo_original>
// kernel: tpu_custom_call.1
$region0: #{tpu_custom_call.1}
  #allocation0 [shape = 'u32[]', space=smem, size = 0x4, offset = 0x4, fixed_abs, tag = 'smem constant byte address 0x4 - core index']
  #allocation1 [shape = 'u32[144,128]{1,0:T(1,128)}', space=vmem, size = 0x12000, scoped, tag = 'internal scratch']
  %s0 = inlined_call_operand.hbm [shape: f32[100,512], index: 0, kind: input, shape index: {}]
  %s1 = inlined_call_operand.vmem [shape: f32[4,100], index: 1, kind: input, shape index: {}]
  %s2 = inlined_call_operand.vmem [shape: f32[4,1], index: 2, kind: input, shape index: {}]
  %s3 = inlined_call_operand.hbm [shape: f32[4,512], index: 3, kind: output, shape index: {}]
  %s4 = sld [smem:[#allocation0]]
  $region49: #{tpu_custom_call.1} parent=0
    _
  %s6 = ssub.s32 1, %s4
  %s7 = scalar_select 0, %s6, %s4
  $region1: #{tpu_custom_call.1} parent=0
    #allocation2 [shape = 'u8[212992]{0}', space=vmem, size = 0x34000, scoped, tag = 'input window, operand 0']
    #allocation3 [shape = 's32[2]{0}', space=sflag, size = 0x8, scoped, tag = 'scoped memory for tpu_custom_call.1']
    #allocation4 [shape = 's32[2]{0}', space=sflag, size = 0x8, scoped, tag = 'scoped memory for tpu_custom_call.1']
    #allocation5 [shape = 'u8[8192]{0}', space=vmem, size = 0x2000, scoped, tag = 'output window, operand 0']
    %8 = vsyncpa [#allocation3], 0
    %s9 = scalar_lea.sflag [#allocation3], 1
    %10 = vsyncpa %s9, 0
    %11 = vsyncpa [#allocation4], 0
    %s12 = scalar_lea.sflag [#allocation4], 1
    %13 = vsyncpa %s12, 0
    loop: start=0, step=1, limit=4
    $region2: #{tpu_custom_call.1} parent=1 // loop_pre_header
      _
    $region3: #{tpu_custom_call.1} parent=1 // loop_header
      %s15 = sphi 0, %s19
      %p16 = scmp.ge.s32.totalorder %s15, 4
      %s25 = sphi 0, %s27
      %s28 = sphi 0, %s25
      %s29 = sphi 0, %s28
      %s45 = sphi 0, %s29
      %s49 = sphi 0, %s49
      %s51 = sphi 0, %s49
      %s52 = sphi 0, %s51
      %s66 = sphi 0, %s52
      %s70 = sphi 0, %s70
      %s72 = sphi 0, %s70
      %s73 = sphi 0, %s72
      %s87 = sphi 0, %s73
      %s93 = sphi 0, %s95
      %s96 = sphi 0, %s93
      %s97 = sphi 0, %s96
      %s113 = sphi 0, %s97
    $region4: #{tpu_custom_call.1} parent=1 // loop_header_branch
      %18 = sbr.rel (%p16) target = $region8
    $region5: #{tpu_custom_call.1} parent=1 // loop_body
      %s20 = ssub.s32 %s15, 1
      %s21 = ssub.s32 %s15, 2
      %s22 = sadd.s32 %s15, 1
      %s23 = ssub.s32 %s15, %s22
      %p24 = scmp.eq.s32.totalorder %s23, 0
      %s26 = sadd.s32 %s25, 1
      %s27 = scalar_select %p24, %s25, %s26
      %p30 = pneg %p24
      %p31 = scmp.eq.s32.totalorder %s15, 1
      %p32 = por %p30, %p31
      %p33 = scmp.ne.s32.totalorder %s25, %s28
      %p34 = scmp.eq.s32.totalorder %s15, 0
      %p35 = por %p33, %p34
      %p36 = scmp.ne.s32.totalorder %s25, %s28
      %p37 = scmp.eq.s32.totalorder %s20, 1
      %p38 = por %p36, %p37
      %p39 = scmp.ne.s32.totalorder %s28, %s29
      %p40 = scmp.eq.s32.totalorder %s20, 0
      %p41 = por %p39, %p40
      %p42 = scmp.ne.s32.totalorder %s28, %s29
      %p43 = scmp.eq.s32.totalorder %s21, 1
      %p44 = por %p42, %p43
      %p46 = scmp.ne.s32.totalorder %s29, %s45
      %p47 = scmp.eq.s32.totalorder %s21, 0
      %p48 = por %p46, %p47
      %s50 = sadd.s32 %s49, 1
      %p53 = scmp.eq.s32.totalorder %s15, 1
      %p54 = scmp.ne.s32.totalorder %s49, %s51
      %p55 = scmp.eq.s32.totalorder %s15, 0
      %p56 = por %p54, %p55
      %p57 = scmp.ne.s32.totalorder %s49, %s51
      %p58 = scmp.eq.s32.totalorder %s20, 1
      %p59 = por %p57, %p58
      %p60 = scmp.ne.s32.totalorder %s51, %s52
      %p61 = scmp.eq.s32.totalorder %s20, 0
      %p62 = por %p60, %p61
      %p63 = scmp.ne.s32.totalorder %s51, %s52
      %p64 = scmp.eq.s32.totalorder %s21, 1
      %p65 = por %p63, %p64
      %p67 = scmp.ne.s32.totalorder %s52, %s66
      %p68 = scmp.eq.s32.totalorder %s21, 0
      %p69 = por %p67, %p68
      %s71 = sadd.s32 %s70, 1
      %p74 = scmp.eq.s32.totalorder %s15, 1
      %p75 = scmp.ne.s32.totalorder %s70, %s72
      %p76 = scmp.eq.s32.totalorder %s15, 0
      %p77 = por %p75, %p76
      %p78 = scmp.ne.s32.totalorder %s70, %s72
      %p79 = scmp.eq.s32.totalorder %s20, 1
      %p80 = por %p78, %p79
      %p81 = scmp.ne.s32.totalorder %s72, %s73
      %p82 = scmp.eq.s32.totalorder %s20, 0
      %p83 = por %p81, %p82
      %p84 = scmp.ne.s32.totalorder %s72, %s73
      %p85 = scmp.eq.s32.totalorder %s21, 1
      %p86 = por %p84, %p85
      %p88 = scmp.ne.s32.totalorder %s73, %s87
      %p89 = scmp.eq.s32.totalorder %s21, 0
      %p90 = por %p88, %p89
      %s91 = ssub.s32 %s15, %s22
      %p92 = scmp.eq.s32.totalorder %s91, 0
      %s94 = sadd.s32 %s93, 1
      %s95 = scalar_select %p92, %s93, %s94
      %p98 = pneg %p92
      %p99 = scmp.eq.s32.totalorder %s15, 1
      %p100 = por %p98, %p99
      %p101 = scmp.ne.s32.totalorder %s93, %s96
      %p102 = scmp.eq.s32.totalorder %s15, 0
      %p103 = por %p101, %p102
      %p104 = scmp.ne.s32.totalorder %s93, %s96
      %p105 = scmp.eq.s32.totalorder %s20, 1
      %p106 = por %p104, %p105
      %p107 = scmp.ne.s32.totalorder %s96, %s97
      %p108 = scmp.eq.s32.totalorder %s20, 0
      %p109 = por %p107, %p108
      %p110 = scmp.ne.s32.totalorder %s96, %s97
      %p111 = scmp.eq.s32.totalorder %s21, 1
      %p112 = por %p110, %p111
      %p114 = scmp.ne.s32.totalorder %s97, %s113
      %p115 = scmp.eq.s32.totalorder %s21, 0
      %p116 = por %p114, %p115
      %p117 = scmp.le.s32.totalorder 1, %s15
      %p118 = scmp.lt.s32.totalorder %s15, 3
      %p119 = pnand %p117, %p118
      %p120 = pneg %p119
      // Predicated region
      $region9: #{tpu_custom_call.1} parent=5 // pred_check
        _
      $region10: #{tpu_custom_call.1} parent=5 // pred_check_branch
        %122 = sbr.rel (%p119) target = $region12
      $region11: #{tpu_custom_call.1} parent=5 // pred_region
        %s123 = ssub.s32 %s15, 1
        // Predicated region
        $region13: #{tpu_custom_call.1} parent=11 // pred_check
          %p124 = pneg %p62
        $region14: #{tpu_custom_call.1} parent=11 // pred_check_branch
          %126 = sbr.rel (%p124) target = $region16
        $region15: #{tpu_custom_call.1} parent=11 // pred_region
          _
        $region16: #{tpu_custom_call.1} parent=11 // pred_fallthru
          _
        // Predicated region
        $region17: #{tpu_custom_call.1} parent=11 // pred_check
          %p127 = pneg %p83
        $region18: #{tpu_custom_call.1} parent=11 // pred_check_branch
          %129 = sbr.rel (%p127) target = $region20
        $region19: #{tpu_custom_call.1} parent=11 // pred_region
          _
        $region20: #{tpu_custom_call.1} parent=11 // pred_fallthru
          _
      $region12: #{tpu_custom_call.1} parent=5 // pred_fallthru
        _
      %p130 = scmp.lt.s32.totalorder %s15, 2
      // Predicated region
      $region21: #{tpu_custom_call.1} parent=5 // pred_check
        %p131 = pneg %p130
      $region22: #{tpu_custom_call.1} parent=5 // pred_check_branch
        %133 = sbr.rel (%p131) target = $region24
      $region23: #{tpu_custom_call.1} parent=5 // pred_region
        // Predicated region
        $region25: #{tpu_custom_call.1} parent=23 // pred_check
          %p134 = pneg %p35
        $region26: #{tpu_custom_call.1} parent=23 // pred_check_branch
          %136 = sbr.rel (%p134) target = $region28
        $region27: #{tpu_custom_call.1} parent=23 // pred_region
          %s137 = sand.u32 %s25, 1
          %s138 = scalar_lea.sflag [#allocation3], %s137
          %s139 = sand.u32 %s25, 1
          %s140 = smul.addr %s139, 208
          %s141 = scalar_lea.vmem [#allocation2], %s140
          %s142 = smul.u32 2, %s15
          %s144 = ssub.s32 3328, 3328
          %145 = vsyncadd %s138, %s144
          %s146 = smul.addr %s142, 128
          %s147 = scalar_lea.hbm %s0, %s146
          %s148 = sshll.u32 %s141, 4
          %s149 = int_to_ptr.vmem [resolvable:$true] %s148
          %154 = dma.hbm_to_vmem [thread:$0]  %s147, 3328, %s149, %s138, 512, 256, 16
        $region28: #{tpu_custom_call.1} parent=23 // pred_fallthru
          _
      $region24: #{tpu_custom_call.1} parent=5 // pred_fallthru
        _
      %p155 = scmp.le.s32.totalorder 1, %s15
      %p156 = scmp.lt.s32.totalorder %s15, 3
      %p157 = pnand %p155, %p156
      %p158 = pneg %p157
      // Predicated region
      $region29: #{tpu_custom_call.1} parent=5 // pred_check
        _
      $region30: #{tpu_custom_call.1} parent=5 // pred_check_branch
        %160 = sbr.rel (%p157) target = $region32
      $region31: #{tpu_custom_call.1} parent=5 // pred_region
        %s161 = ssub.s32 %s15, 1
        %s162 = sand.u32 %s28, 1
        %s163 = scalar_lea.sflag [#allocation3], %s162
        %s164 = sand.u32 %s28, 1
        %s165 = smul.addr %s164, 208
        %s166 = scalar_lea.vmem [#allocation2], %s165
        // Predicated region
        $region33: #{tpu_custom_call.1} parent=31 // pred_check
          %p167 = pneg %p41
        $region34: #{tpu_custom_call.1} parent=31 // pred_check_branch
          %169 = sbr.rel (%p167) target = $region36
        $region35: #{tpu_custom_call.1} parent=31 // pred_region
          %170 = dma.done %s163, 3328
        $region36: #{tpu_custom_call.1} parent=31 // pred_fallthru
          _
        %s171 = sand.u32 %s28, 1
        %s172 = scalar_lea.sflag [#allocation3], %s171
        %s173 = sand.u32 %s28, 1
        %s174 = smul.addr %s173, 208
        %s175 = scalar_lea.vmem [#allocation2], %s174
        %p176 = pneg %p41
        %p177 = pneg %p38
        %p178 = pneg %p62
        %p179 = pneg %p59
        %p180 = pneg %p83
        %p181 = pneg %p80
        %p182 = pneg %p109
        %p183 = pneg %p106
        %s184 = sand.u32 %s96, 1
        %s185 = scalar_lea.sflag [#allocation4], %s184
        %s186 = sand.u32 %s96, 1
        %s187 = smul.addr %s186, 8
        %s188 = scalar_lea.vmem [#allocation5], %s187
        %s189 = smul.u32 2, %s20
        %s190 = smul.u32 2, %s20
        %v191 = vld [vmem:[%s1] sm:$0xf]
        %v192 = vld [vmem:[%s166] sm:$0xff]
        %v193 = vld [vmem:[%s166 + $0x8] sm:$0xff]
        %v194 = vld [vmem:[%s166 + $0x10] sm:$0xff]
        %v195 = vld [vmem:[%s166 + $0x18] sm:$0xff]
        %v196 = vld [vmem:[%s166 + $0x20] sm:$0xff]
        %v197 = vld [vmem:[%s166 + $0x28] sm:$0xff]
        %v198 = vld [vmem:[%s166 + $0x30] sm:$0xff]
        %v199 = vld [vmem:[%s166 + $0x38] sm:$0xff]
        %v200 = vld [vmem:[%s166 + $0x40] sm:$0xff]
        %v201 = vld [vmem:[%s166 + $0x48] sm:$0xff]
        %v202 = vld [vmem:[%s166 + $0x50] sm:$0xff]
        %v203 = vld [vmem:[%s166 + $0x58] sm:$0xff]
        %v204 = vld [vmem:[%s166 + $0x60] sm:$0xff]
        %v205 = vld [vmem:[%s166 + $0x68] sm:$0xff]
        %v206 = vld [vmem:[%s166 + $0x70] sm:$0xff]
        %v207 = vld [vmem:[%s166 + $0x78] sm:$0xff]
        %v208 = vld [vmem:[%s166 + $0x80] sm:$0xff]
        %v209 = vld [vmem:[%s166 + $0x88] sm:$0xff]
        %v210 = vld [vmem:[%s166 + $0x90] sm:$0xff]
        %v211 = vld [vmem:[%s166 + $0x98] sm:$0xff]
        %v212 = vld [vmem:[%s166 + $0xa0] sm:$0xff]
        %v213 = vld [vmem:[%s166 + $0xa8] sm:$0xff]
        %v214 = vld [vmem:[%s166 + $0xb0] sm:$0xff]
        %v215 = vld [vmem:[%s166 + $0xb8] sm:$0xff]
        %v216 = vld [vmem:[%s166 + $0xc0] sm:$0xf]
        %v217 = vld [vmem:[%s166 + $0xc8] sm:$0xf]
        %v218 = vld [vmem:[%s2] sm:$0xf]
        %220 = vset.pattern.permute.xlu0 0
        %221 = vperm.xlu0 %220, %v218
        %v222 = vpop.permute.xlu0 %221
        %vm224 = vcmask 818176
        %v226 = vsel %vm224, %v191, 0
        %vm228 = vcmask 1043456
        %v230 = vsel %vm228, %v216, 0
        %v233 = vsel %vm228, %v217, 0
        %235 = vmatprep.subr.mxu0 %v193
        %236 = vmatpush1.msra.mxu0 %v192
        %237 = vmatprep.subr.mxu0 %v195
        %238 = vmatpush1.msra.mxu0 %v194
        %239 = vmatprep.subr.mxu0 %v197
        %240 = vmatpush1.msra.mxu0 %v196
        %241 = vmatprep.subr.mxu0 %v199
        %242 = vmatpush1.msra.mxu0 %v198
        %243 = vmatprep.subr.mxu0 %v201
        %244 = vmatpush1.msra.mxu0 %v200
        %245 = vmatprep.subr.mxu0 %v203
        %246 = vmatpush1.msra.mxu0 %v202
        %247 = vmatprep.subr.mxu0 %v205
        %248 = vmatpush1.msra.mxu0 %v204
        %249 = vmatprep.subr.mxu0 %v207
        %250 = vmatpush1.msra.mxu0 %v206
        %251 = vmatprep.subr.mxu0 %v209
        %252 = vmatpush1.msra.mxu0 %v208
        %253 = vmatprep.subr.mxu0 %v211
        %254 = vmatpush1.msra.mxu0 %v210
        %255 = vmatprep.subr.mxu0 %v213
        %256 = vmatpush1.msra.mxu0 %v212
        %257 = vmatprep.subr.mxu0 %v215
        %258 = vmatpush1.msra.mxu0 %v214
        %259 = vmatprep.subr.mxu0 %v233
        %260 = vmatpush1.msra.mxu0 %v230
        %261 = vmatprep.subr.mxu0 0.0
        %262 = vmatpush1.msra.mxu0 0.0
        %263 = vmatprep.subr.mxu0 0.0
        %264 = vmatpush1.msra.mxu0 0.0
        %265 = vmatprep.subr.mxu0 0.0
        %266 = vmatpush1.msra.mxu0 0.0
        %267 = vmatprep.subr.mxu0 0.0
        %268 = vmatpush1.msra.mxu0 0.0
        %269 = vmatprep.subr.mxu0 0.0
        %270 = vmatpush1.msra.mxu0 0.0
        %271 = vmatprep.subr.mxu0 0.0
        %272 = vmatpush1.msra.mxu0 0.0
        %273 = vmatprep.subr.mxu0 0.0
        %274 = vmatpush1.msra.mxu0 0.0
        %275 = vmatprep.subr.mxu0 0.0
        %276 = vmatpush1.msra.mxu0 0.0
        %277 = vmatprep.subr.mxu0 0.0
        %278 = vmatpush1.msra.mxu0 0.0
        %279 = vmatprep.subr.mxu0 0.0
        %280 = vmatpush1.msra.mxu0 0.0
        %281 = vmatprep.subr.mxu0 0.0
        %282 = vmatpush1.msra.mxu0 0.0
        %283 = vmatprep.subr.mxu0 0.0
        %284 = vmatpush1.msra.mxu0 0.0
        %285 = vmatprep.subr.mxu0 0.0
        %286 = vmatpush1.msra.mxu0 0.0
        %287 = vmatprep.subr.mxu0 0.0
        %288 = vmatpush1.msra.mxu0 0.0
        %289 = vmatprep.subr.mxu0 0.0
        %290 = vmatpush1.msra.mxu0 0.0
        %291 = vmatprep.subr.mxu0 0.0
        %292 = vmatpush1.msra.mxu0 0.0
        %293 = vmatprep.subr.mxu0 0.0
        %294 = vmatpush1.msra.mxu0 0.0
        %295 = vmatprep.subr.mxu0 0.0
        %296 = vmatpush1.msra.mxu0 0.0
        %297 = vmatprep.subr.mxu0 0.0
        %298 = vmatpush1.msra.mxu0 0.0
        %299 = vmatprep.mubr.f32.mxu0 0.0
        %300 = vmatmul.mubr.f32.gmra.mrb[0].mxu0 %v226
        %v301 = vpop.f32.mrb[0].mxu0
        %v302 = vadd.f32 %v222, %v301
        %v303 = vpop.f32.mrb[0].mxu0
        %v304 = vadd.f32 %v222, %v303
        %305 = vdwg.mxu0
        %v308 = vcombine.low %v302, %v304
        %310 = vst [vmem:[%s188] sm:$0xff] %v308
        %s311 = sand.u32 %s96, 1
        %s312 = scalar_lea.sflag [#allocation4], %s311
        %s313 = sand.u32 %s96, 1
        %s314 = smul.addr %s313, 8
        %s315 = scalar_lea.vmem [#allocation5], %s314
        // Predicated region
        $region37: #{tpu_custom_call.1} parent=31 // pred_check
          %p316 = pneg %p106
        $region38: #{tpu_custom_call.1} parent=31 // pred_check_branch
          %318 = sbr.rel (%p316) target = $region40
        $region39: #{tpu_custom_call.1} parent=31 // pred_region
          %s319 = smul.u32 2, %s20
          %s321 = ssub.s32 128, 128
          %322 = vsyncadd %s312, %s321
          %s323 = smul.addr %s319, 64
          %s324 = scalar_lea.hbm %s3, %s323
          %s326 = sshll.u32 %s315, 4
          %s327 = int_to_ptr.vmem [resolvable:$true] %s326
          %329 = dma.vmem_to_hbm [thread:$0]  %s327, 128, %s324, %s312
        $region40: #{tpu_custom_call.1} parent=31 // pred_fallthru
          _
      $region32: #{tpu_custom_call.1} parent=5 // pred_fallthru
        _
      %p330 = scmp.le.s32.totalorder 2, %s15
      // Predicated region
      $region41: #{tpu_custom_call.1} parent=5 // pred_check
        %p331 = pneg %p330
      $region42: #{tpu_custom_call.1} parent=5 // pred_check_branch
        %333 = sbr.rel (%p331) target = $region44
      $region43: #{tpu_custom_call.1} parent=5 // pred_region
        %s334 = ssub.s32 %s15, 2
        // Predicated region
        $region45: #{tpu_custom_call.1} parent=43 // pred_check
          %p335 = pneg %p112
        $region46: #{tpu_custom_call.1} parent=43 // pred_check_branch
          %337 = sbr.rel (%p335) target = $region48
        $region47: #{tpu_custom_call.1} parent=43 // pred_region
          %s338 = sand.u32 %s97, 1
          %s339 = scalar_lea.sflag [#allocation4], %s338
          %s340 = sand.u32 %s97, 1
          %s341 = smul.addr %s340, 8
          %s342 = scalar_lea.vmem [#allocation5], %s341
          %343 = dma.done %s339, 128
        $region48: #{tpu_custom_call.1} parent=43 // pred_fallthru
          _
      $region44: #{tpu_custom_call.1} parent=5 // pred_fallthru
        _
    $region6: #{tpu_custom_call.1} parent=1 // loop_footer
      %s19 = sadd.s32 1, %s15
    $region7: #{tpu_custom_call.1} parent=1 // loop_footer_branch
      %14 = sbr.rel target = $region3
    $region8: #{tpu_custom_call.1} parent=1 // loop_exit
      _
    %344 = vsyncpa [#allocation3], 1
    %s345 = scalar_lea.sflag [#allocation3], 1
    %346 = vsyncpa %s345, 1
    %347 = vsyncpa [#allocation4], 1
    %s348 = scalar_lea.sflag [#allocation4], 1
    %349 = vsyncpa %s348, 1

</llo_original>
